<compile_context>
chip_gen: v7x
topology: tpu7x:2x2x1
jax: 0.10.0
libtpu: 0.0.40
codegen_flags: <defaults>
</compile_context>

<pallas_src>
import functools

import numpy as np

import jax
import jax.numpy as jnp
from jax.experimental import pallas as pl
from jax.experimental.pallas import tpu as pltpu

_MIB = 1024 * 1024


def _cdiv(a, b):
    return -(-a // b)


# ----------------------------------------------------------------------------
# Generation-aware VMEM budgets
# ----------------------------------------------------------------------------
def _vmem_capacity_bytes():
    try:
        return int(pltpu.get_tpu_info().vmem_capacity_bytes)
    except Exception:
        return 64 * _MIB  # conservative fallback (v7x per-TC size)


def _budgets():
    cap = _vmem_capacity_bytes()
    if cap >= 100 * _MIB:
        # v5e / v6e: 128 MiB VMEM per core.
        return {"image": 28 * _MIB, "kron": 16 * _MIB, "limit": 96 * _MIB}
    # v7x: 64 MiB per TensorCore, both cores active under "parallel".
    return {"image": 12 * _MIB, "kron": 8 * _MIB, "limit": 48 * _MIB}


# ----------------------------------------------------------------------------
# DFT bases (exact integer phase reduction mod n before cos/sin)
# ----------------------------------------------------------------------------
def _dft_cos_sin(n):
    k = np.arange(n, dtype=np.int64)
    idx = np.mod(np.outer(k, k), n).astype(np.float64)
    ang = (2.0 * np.pi / n) * idx
    return np.cos(ang), np.sin(ang)


def _kron_basis(h, w):
    """Fused 2-D DFT basis [C2 | S2] with D2 = C2 - i*S2 = D_H (x) D_W.

    D2 is symmetric, so for row-vector images x:  x @ C2 = Re(F),
    x @ S2 = -Im(F); |F| contributions are |x@C2| + |x@S2|.
    """
    ch, sh = _dft_cos_sin(h)
    cw, sw = _dft_cos_sin(w)
    c2 = np.kron(ch, cw) - np.kron(sh, sw)         # (HW, HW)
    s2 = np.kron(ch, sw) + np.kron(sh, cw)         # (HW, HW)
    basis = np.concatenate([c2, s2], axis=1)       # (HW, 2*HW)
    return jnp.asarray(basis, dtype=jnp.float32)


def _sep_bases(h, w, stage2_bf16):
    ch, sh = _dft_cos_sin(h)
    cw, sw = _dft_cos_sin(w)
    wb = np.concatenate([cw, sw], axis=1)          # (W, 2W) = [C_W | S_W]
    hb = np.concatenate([ch, sh], axis=0)          # (2H, H) = [C_H ; S_H]
    hb_dtype = jnp.bfloat16 if stage2_bf16 else jnp.float32
    return jnp.asarray(wb, jnp.bfloat16), jnp.asarray(hb, hb_dtype)


# ----------------------------------------------------------------------------
# Tile selection (bytes-per-step target, VMEM budget, megacore-friendly grid)
# ----------------------------------------------------------------------------
def _kron_tile(b, hw, image_budget):
    bytes_per_img = hw * 4                               # f32 image
    tb_target = max(1, _cdiv(int(1.5 * _MIB), bytes_per_img))
    tb_cap = max(1, image_budget // (4 * bytes_per_img))  # 2 inputs x 2 buffers
    tb = max(1, min(b, tb_target, tb_cap))
    if b >= 16 and tb >= b:
        tb = _cdiv(b, 2)                                 # force G >= 2 (megacore)
    if tb < b:
        tb = max(8, (tb // 8) * 8)                       # sublane-aligned rows
        if tb >= b:
            tb = b
    return tb, _cdiv(b, tb)


def _sep_tile(b, h, w, image_budget):
    bytes_per_img = h * w * 4
    tb_target = max(1, _cdiv(int(1.5 * _MIB), bytes_per_img), _cdiv(256, h))
    tb_cap = max(1, image_budget // (4 * bytes_per_img))
    tb = max(1, min(b, tb_target, tb_cap, 16))           # 16 caps static unroll
    if b >= 2 and tb >= b:
        tb = _cdiv(b, 2)                                 # force G >= 2 (megacore)
    return tb, _cdiv(b, tb)


# ----------------------------------------------------------------------------
# Kernels
# ----------------------------------------------------------------------------
def _kron_kernel(basis_ref, a_ref, b_ref, out_ref, *, tb, batch, need_mask):
    """Small-image path: one f32 matmul against the fused 2-D DFT basis."""
    d = a_ref[...] - b_ref[...]                          # (TB, HW) f32
    if need_mask:
        row = (jax.lax.broadcasted_iota(jnp.int32, (tb, 1), 0)
               + pl.program_id(0) * tb)
        d = jnp.where(row < batch, d, 0.0)
    q = jnp.dot(d, basis_ref[...], preferred_element_type=jnp.float32)
    total = jnp.sum(jnp.abs(q))                          # sum|Re| + sum|Im|
    out_ref[...] = jnp.full((1, 8, 128), total, dtype=jnp.float32)


def _sep_kernel(wb_ref, hb_ref, a_ref, b_ref, out_ref, *,
                tb, h, w, batch, need_mask, stage2_bf16):
    """General path: separable 2-D DFT via two matmul stages."""
    d = a_ref[...] - b_ref[...]                          # (TB, H, W) f32
    if need_mask:
        row = (jax.lax.broadcasted_iota(jnp.int32, (tb, 1, 1), 0)
               + pl.program_id(0) * tb)
        d = jnp.where(row < batch, d, 0.0)

    # Stage 1: W-axis DFT, one big matmul, fused [C_W | S_W] weight-stationary.
    x = d.astype(jnp.bfloat16).reshape(tb * h, w)
    uv = jnp.dot(x, wb_ref[...], preferred_element_type=jnp.float32)  # (TB*H, 2W)
    if stage2_bf16:
        uv = uv.astype(jnp.bfloat16)
    uv3 = uv.reshape(tb, h, 2 * w)

    # Stage 2: H-axis DFT, weight-stationary [C_H ; S_H] per image (no
    # broadcast of the basis across TB).
    hb = hb_ref[...]                                     # (2H, H)
    total = jnp.float32(0.0)
    for t in range(tb):                                  # small static unroll
        q = jnp.dot(hb, uv3[t], preferred_element_type=jnp.float32)   # (2H, 2W)
        re = q[:h, :w] - q[h:, w:]                       #  Re(F)
        im = q[h:, :w] + q[:h, w:]                       # -Im(F); same |.|
        total = total + jnp.sum(jnp.abs(re) + jnp.abs(im))
    out_ref[...] = jnp.full((1, 8, 128), total, dtype=jnp.float32)


# ----------------------------------------------------------------------------
# Wrapper
# ----------------------------------------------------------------------------
@functools.partial(jax.jit, static_argnames=("loss_weight",))
def fft_loss(img1, img2, loss_weight=1.0):
    """Pallas TPU implementation of FFTLoss.forward(img1, img2)."""
    assert img1.shape == img2.shape and img1.ndim == 4
    N, C, H, W = img1.shape
    B, HW = N * C, H * W

    budgets = _budgets()
    a = img1.astype(jnp.float32)
    b = img2.astype(jnp.float32)

    # Fast path iff the f32 Kronecker-fused basis fits the per-chip budget.
    use_kron = (2 * HW * HW * 4) <= budgets["kron"]

    if use_kron:
        TB, G = _kron_tile(B, HW, budgets["image"])
        need_mask = (G * TB != B)
        basis = _kron_basis(H, W)
        kernel = functools.partial(_kron_kernel, tb=TB, batch=B,
                                   need_mask=need_mask)
        est = (4 * TB * HW * 4              # 2 inputs x double-buffered blocks
               + 2 * HW * HW * 4            # basis (single-buffered)
               + 2 * TB * HW * 4            # q intermediate
               + 2 * _MIB)
        vmem_limit = int(min(budgets["limit"], max(16 * _MIB, 2 * est)))
        partials = pl.pallas_call(
            kernel,
            out_shape=jax.ShapeDtypeStruct((G, 8, 128), jnp.float32),
            grid=(G,),
            in_specs=[
                pl.BlockSpec((HW, 2 * HW), lambda g: (0, 0),
                             pipeline_mode=pl.Buffered(1)),       # 2-D basis
                pl.BlockSpec((TB, HW), lambda g: (g, 0)),         # img1 block
                pl.BlockSpec((TB, HW), lambda g: (g, 0)),         # img2 block
            ],
            out_specs=pl.BlockSpec((1, 8, 128), lambda g: (g, 0, 0)),
            compiler_params=pltpu.CompilerParams(
                dimension_semantics=("parallel",),
                vmem_limit_bytes=vmem_limit),
        )(basis, a.reshape(B, HW), b.reshape(B, HW))
    else:
        TB, G = _sep_tile(B, H, W, budgets["image"])
        need_mask = (G * TB != B)
        stage2_bf16 = HW >= 128 * 128        # bf16 stage-2 only when compute-bound
        wb, hb = _sep_bases(H, W, stage2_bf16)
        kernel = functools.partial(_sep_kernel, tb=TB, h=H, w=W, batch=B,
                                   need_mask=need_mask, stage2_bf16=stage2_bf16)
        est = (4 * TB * HW * 4                              # image blocks
               + W * 2 * W * 2 + 2 * H * H * 4              # bases (single-buf)
               + TB * H * 2 * W * 4 * 2                     # uv + diff temps
               + 2 * _MIB)
        vmem_limit = int(min(budgets["limit"], max(16 * _MIB, 2 * est)))
        partials = pl.pallas_call(
            kernel,
            out_shape=jax.ShapeDtypeStruct((G, 8, 128), jnp.float32),
            grid=(G,),
            in_specs=[
                pl.BlockSpec((W, 2 * W), lambda g: (0, 0),
                             pipeline_mode=pl.Buffered(1)),       # [C_W | S_W]
                pl.BlockSpec((2 * H, H), lambda g: (0, 0),
                             pipeline_mode=pl.Buffered(1)),       # [C_H ; S_H]
                pl.BlockSpec((TB, H, W), lambda g: (g, 0, 0)),    # img1 block
                pl.BlockSpec((TB, H, W), lambda g: (g, 0, 0)),    # img2 block
            ],
            out_specs=pl.BlockSpec((1, 8, 128), lambda g: (g, 0, 0)),
            compiler_params=pltpu.CompilerParams(
                dimension_semantics=("parallel",),
                vmem_limit_bytes=vmem_limit),
        )(wb, hb, a.reshape(B, H, W), b.reshape(B, H, W))

    total = jnp.sum(partials[:, 0, 0])
    n_elems = jnp.float32(B * HW * 2)        # mean over stacked real/imag tensor
    return (jnp.float32(loss_weight) * total / n_elems).astype(jnp.float32)


if __name__ == "__main__":
    key = jax.random.PRNGKey(0)
    k1, k2 = jax.random.split(key)
    # Small NCHW shapes consistent with the module.
    img1 = jax.random.normal(k1, (2, 4, 16, 16), dtype=jnp.float32)
    img2 = jax.random.normal(k2, (2, 4, 16, 16), dtype=jnp.float32)

    loss = fft_loss(img1, img2, loss_weight=1.0)
    jax.block_until_ready(loss)

    # Sanity check against the f32 FFT reference.
    df = jnp.fft.fft2(img1) - jnp.fft.fft2(img2)
    ref = float(jnp.mean(jnp.abs(jnp.stack([df.real, df.imag], axis=-1))))
    got = float(loss)
    assert abs(got - ref) <= 0.05 * abs(ref) + 1e-6, (got, ref)

    print("KERNEL_OK")
</pallas_src>

<mosaic_0001>
module attributes {stable_mosaic.version = 11 : i64} {
  func.func @_kron_kernel(%arg0: i32, %arg1: memref<256x512xf32, #tpu.memory_space<vmem>>, %arg2: memref<8x256xf32, #tpu.memory_space<vmem>>, %arg3: memref<8x256xf32, #tpu.memory_space<vmem>>, %arg4: memref<1x8x128xf32, #tpu.memory_space<vmem>>) attributes {dimension_semantics = [#tpu.dimension_semantics<parallel>], iteration_bounds = array<i64: 1>, scalar_prefetch = 0 : i64, scratch_operands = 0 : i64, tpu.core_type = #tpu.core_type<tc>, window_params = [{pipeline_mode = #tpu.pipeline_mode<synchronous>, transform_indices = @transform_0, window_bounds = array<i64: 256, 512>}, {transform_indices = @transform_1, window_bounds = array<i64: 8, 256>}, {transform_indices = @transform_2, window_bounds = array<i64: 8, 256>}, {transform_indices = @transform_3, window_bounds = array<i64: 1, 8, 128>}]} {
    %c0 = arith.constant 0 : index
    %c0_0 = arith.constant 0 : index
    %0 = vector.load %arg2[%c0, %c0_0] : memref<8x256xf32, #tpu.memory_space<vmem>>, vector<8x256xf32>
    %c0_1 = arith.constant 0 : index
    %c0_2 = arith.constant 0 : index
    %1 = vector.load %arg3[%c0_1, %c0_2] : memref<8x256xf32, #tpu.memory_space<vmem>>, vector<8x256xf32>
    %2 = arith.subf %0, %1 : vector<8x256xf32>
    %c0_3 = arith.constant 0 : index
    %c0_4 = arith.constant 0 : index
    %3 = vector.load %arg1[%c0_3, %c0_4] : memref<256x512xf32, #tpu.memory_space<vmem>>, vector<256x512xf32>
    %cst = arith.constant dense<0.000000e+00> : vector<8x512xf32>
    %4 = tpu.matmul %2, %3, %cst {dimension_numbers = #tpu.dot_dimension_numbers<[1], [0], [0], [1], [0, 0, 1, 1], [], []>} : vector<8x256xf32>, vector<256x512xf32>, vector<8x512xf32> -> vector<8x512xf32>
    %5 = math.absf %4 : vector<8x512xf32>
    %6 = vector.shape_cast %5 : vector<8x512xf32> to vector<1x8x512xf32>
    %cst_5 = arith.constant dense<0.000000e+00> : vector<1xf32>
    %7 = vector.multi_reduction <add>, %6, %cst_5 [1, 2] : vector<1x8x512xf32> to vector<1xf32>
    %8 = vector.shape_cast %7 : vector<1xf32> to vector<1x1x1xf32>
    %9 = vector.extract %8[0, 0, 0] : f32 from vector<1x1x1xf32>
    %10 = vector.broadcast %9 : f32 to vector<1x8x128xf32>
    %c0_6 = arith.constant 0 : index
    %c0_7 = arith.constant 0 : index
    %c0_8 = arith.constant 0 : index
    %11 = vector.load %arg4[%c0_6, %c0_7, %c0_8] : memref<1x8x128xf32, #tpu.memory_space<vmem>>, vector<1x8x128xf32>
    tpu.vector_store %arg4[%c0_6, %c0_7, %c0_8], %10 {strides = array<i32>} : memref<1x8x128xf32, #tpu.memory_space<vmem>>, vector<1x8x128xf32>,
    return
  }
  func.func @transform_0(%arg0: i32) -> (i32, i32) {
    %c0_i32 = arith.constant 0 : i32
    %c0_i32_0 = arith.constant 0 : i32
    %c0_i32_1 = arith.constant 0 : i32
    return %c0_i32, %c0_i32_0 : i32, i32
  }
  func.func @transform_1(%arg0: i32) -> (i32, i32) {
    %c0_i32 = arith.constant 0 : i32
    %c0_i32_0 = arith.constant 0 : i32
    return %arg0, %c0_i32 : i32, i32
  }
  func.func @transform_2(%arg0: i32) -> (i32, i32) {
    %c0_i32 = arith.constant 0 : i32
    %c0_i32_0 = arith.constant 0 : i32
    return %arg0, %c0_i32 : i32, i32
  }
  func.func @transform_3(%arg0: i32) -> (i32, i32, i32) {
    %c0_i32 = arith.constant 0 : i32
    %c0_i32_0 = arith.constant 0 : i32
    %c0_i32_1 = arith.constant 0 : i32
    return %arg0, %c0_i32, %c0_i32_0 : i32, i32, i32
  }
}

</mosaic_0001>

<llo_original>
// kernel: fft_loss.1
$region0: #{fft_loss.1}
  #allocation0 [shape = 'u32[]', space=smem, size = 0x4, offset = 0x4, fixed_abs, tag = 'smem constant byte address 0x4 - core index']
  #allocation1 [shape = 'u32[144,128]{1,0:T(1,128)}', space=vmem, size = 0x12000, scoped, tag = 'internal scratch']
  %s0 = inlined_call_operand.hbm [shape: f32[256,512], index: 0, kind: input, shape index: {}]
  %s1 = inlined_call_operand.vmem [shape: f32[8,256], index: 1, kind: input, shape index: {}]
  %s2 = inlined_call_operand.vmem [shape: f32[8,256], index: 2, kind: input, shape index: {}]
  %s3 = inlined_call_operand.vmem [shape: f32[1,8,128], index: 3, kind: output, shape index: {}]
  %s4 = sld [smem:[#allocation0]]
  $region26: #{fft_loss.1} parent=0
    _
  %s6 = ssub.s32 1, %s4
  %s7 = scalar_select 0, %s6, %s4
  $region1: #{fft_loss.1} parent=0
    #allocation2 [shape = 'u8[524288]{0}', space=vmem, size = 0x80000, scoped, tag = 'input window, operand 0, single buffered']
    #allocation3 [shape = 's32[1]{0}', space=sflag, size = 0x4, scoped, tag = 'scoped memory for fft_loss.1']
    %8 = vsyncpa [#allocation3], 0
    // Predicated region
    $region2: #{fft_loss.1} parent=1 // pred_check
      _
    $region3: #{fft_loss.1} parent=1 // pred_check_branch
      %10 = sbr.rel (0) target = $region5
    $region4: #{fft_loss.1} parent=1 // pred_region
      %s12 = ssub.s32 16384, 16384
      %13 = vsyncadd [#allocation3], %s12
      %s14 = sshll.u32 [#allocation2], 4
      %s15 = int_to_ptr.vmem [resolvable:$true] %s14
      %20 = dma.hbm_to_vmem [thread:$0]  %s0, 16384, %s15, [#allocation3], 512, 512, 32
    $region5: #{fft_loss.1} parent=1 // pred_fallthru
      _
    // Predicated region
    $region6: #{fft_loss.1} parent=1 // pred_check
      _
    $region7: #{fft_loss.1} parent=1 // pred_check_branch
      %22 = sbr.rel (0) target = $region9
    $region8: #{fft_loss.1} parent=1 // pred_region
      _
    $region9: #{fft_loss.1} parent=1 // pred_fallthru
      _
    // Predicated region
    $region10: #{fft_loss.1} parent=1 // pred_check
      _
    $region11: #{fft_loss.1} parent=1 // pred_check_branch
      %24 = sbr.rel (0) target = $region13
    $region12: #{fft_loss.1} parent=1 // pred_region
      _
    $region13: #{fft_loss.1} parent=1 // pred_fallthru
      _
    // Predicated region
    $region14: #{fft_loss.1} parent=1 // pred_check
      _
    $region15: #{fft_loss.1} parent=1 // pred_check_branch
      %26 = sbr.rel (0) target = $region17
    $region16: #{fft_loss.1} parent=1 // pred_region
      %27 = dma.done [#allocation3], 16384
    $region17: #{fft_loss.1} parent=1 // pred_fallthru
      _
    %v28 = vld [vmem:[%s1] sm:$0xff]
    %v29 = vld [vmem:[%s1 + $0x8] sm:$0xff]
    %v30 = vld [vmem:[%s2] sm:$0xff]
    %v31 = vld [vmem:[%s2 + $0x8] sm:$0xff]
    %v32 = vsub.f32 %v28, %v30
    %v33 = vsub.f32 %v29, %v31
    %v34 = vld [vmem:[#allocation2] sm:$0xff]
    %v35 = vld [vmem:[#allocation2 + $0x8] sm:$0xff]
    %v36 = vld [vmem:[#allocation2 + $0x10] sm:$0xff]
    %v37 = vld [vmem:[#allocation2 + $0x18] sm:$0xff]
    %v38 = vld [vmem:[#allocation2 + $0x20] sm:$0xff]
    %v39 = vld [vmem:[#allocation2 + $0x28] sm:$0xff]
    %v40 = vld [vmem:[#allocation2 + $0x30] sm:$0xff]
    %v41 = vld [vmem:[#allocation2 + $0x38] sm:$0xff]
    %v42 = vld [vmem:[#allocation2 + $0x40] sm:$0xff]
    %v43 = vld [vmem:[#allocation2 + $0x48] sm:$0xff]
    %v44 = vld [vmem:[#allocation2 + $0x50] sm:$0xff]
    %v45 = vld [vmem:[#allocation2 + $0x58] sm:$0xff]
    %v46 = vld [vmem:[#allocation2 + $0x60] sm:$0xff]
    %v47 = vld [vmem:[#allocation2 + $0x68] sm:$0xff]
    %v48 = vld [vmem:[#allocation2 + $0x70] sm:$0xff]
    %v49 = vld [vmem:[#allocation2 + $0x78] sm:$0xff]
    %v50 = vld [vmem:[#allocation2 + $0x80] sm:$0xff]
    %v51 = vld [vmem:[#allocation2 + $0x88] sm:$0xff]
    %v52 = vld [vmem:[#allocation2 + $0x90] sm:$0xff]
    %v53 = vld [vmem:[#allocation2 + $0x98] sm:$0xff]
    %v54 = vld [vmem:[#allocation2 + $0xa0] sm:$0xff]
    %v55 = vld [vmem:[#allocation2 + $0xa8] sm:$0xff]
    %v56 = vld [vmem:[#allocation2 + $0xb0] sm:$0xff]
    %v57 = vld [vmem:[#allocation2 + $0xb8] sm:$0xff]
    %v58 = vld [vmem:[#allocation2 + $0xc0] sm:$0xff]
    %v59 = vld [vmem:[#allocation2 + $0xc8] sm:$0xff]
    %v60 = vld [vmem:[#allocation2 + $0xd0] sm:$0xff]
    %v61 = vld [vmem:[#allocation2 + $0xd8] sm:$0xff]
    %v62 = vld [vmem:[#allocation2 + $0xe0] sm:$0xff]
    %v63 = vld [vmem:[#allocation2 + $0xe8] sm:$0xff]
    %v64 = vld [vmem:[#allocation2 + $0xf0] sm:$0xff]
    %v65 = vld [vmem:[#allocation2 + $0xf8] sm:$0xff]
    %v66 = vld [vmem:[#allocation2 + $0x100] sm:$0xff]
    %v67 = vld [vmem:[#allocation2 + $0x108] sm:$0xff]
    %v68 = vld [vmem:[#allocation2 + $0x110] sm:$0xff]
    %v69 = vld [vmem:[#allocation2 + $0x118] sm:$0xff]
    %v70 = vld [vmem:[#allocation2 + $0x120] sm:$0xff]
    %v71 = vld [vmem:[#allocation2 + $0x128] sm:$0xff]
    %v72 = vld [vmem:[#allocation2 + $0x130] sm:$0xff]
    %v73 = vld [vmem:[#allocation2 + $0x138] sm:$0xff]
    %v74 = vld [vmem:[#allocation2 + $0x140] sm:$0xff]
    %v75 = vld [vmem:[#allocation2 + $0x148] sm:$0xff]
    %v76 = vld [vmem:[#allocation2 + $0x150] sm:$0xff]
    %v77 = vld [vmem:[#allocation2 + $0x158] sm:$0xff]
    %v78 = vld [vmem:[#allocation2 + $0x160] sm:$0xff]
    %v79 = vld [vmem:[#allocation2 + $0x168] sm:$0xff]
    %v80 = vld [vmem:[#allocation2 + $0x170] sm:$0xff]
    %v81 = vld [vmem:[#allocation2 + $0x178] sm:$0xff]
    %v82 = vld [vmem:[#allocation2 + $0x180] sm:$0xff]
    %v83 = vld [vmem:[#allocation2 + $0x188] sm:$0xff]
    %v84 = vld [vmem:[#allocation2 + $0x190] sm:$0xff]
    %v85 = vld [vmem:[#allocation2 + $0x198] sm:$0xff]
    %v86 = vld [vmem:[#allocation2 + $0x1a0] sm:$0xff]
    %v87 = vld [vmem:[#allocation2 + $0x1a8] sm:$0xff]
    %v88 = vld [vmem:[#allocation2 + $0x1b0] sm:$0xff]
    %v89 = vld [vmem:[#allocation2 + $0x1b8] sm:$0xff]
    %v90 = vld [vmem:[#allocation2 + $0x1c0] sm:$0xff]
    %v91 = vld [vmem:[#allocation2 + $0x1c8] sm:$0xff]
    %v92 = vld [vmem:[#allocation2 + $0x1d0] sm:$0xff]
    %v93 = vld [vmem:[#allocation2 + $0x1d8] sm:$0xff]
    %v94 = vld [vmem:[#allocation2 + $0x1e0] sm:$0xff]
    %v95 = vld [vmem:[#allocation2 + $0x1e8] sm:$0xff]
    %v96 = vld [vmem:[#allocation2 + $0x1f0] sm:$0xff]
    %v97 = vld [vmem:[#allocation2 + $0x1f8] sm:$0xff]
    %v98 = vld [vmem:[#allocation2 + $0x200] sm:$0xff]
    %v99 = vld [vmem:[#allocation2 + $0x208] sm:$0xff]
    %v100 = vld [vmem:[#allocation2 + $0x210] sm:$0xff]
    %v101 = vld [vmem:[#allocation2 + $0x218] sm:$0xff]
    %v102 = vld [vmem:[#allocation2 + $0x220] sm:$0xff]
    %v103 = vld [vmem:[#allocation2 + $0x228] sm:$0xff]
    %v104 = vld [vmem:[#allocation2 + $0x230] sm:$0xff]
    %v105 = vld [vmem:[#allocation2 + $0x238] sm:$0xff]
    %v106 = vld [vmem:[#allocation2 + $0x240] sm:$0xff]
    %v107 = vld [vmem:[#allocation2 + $0x248] sm:$0xff]
    %v108 = vld [vmem:[#allocation2 + $0x250] sm:$0xff]
    %v109 = vld [vmem:[#allocation2 + $0x258] sm:$0xff]
    %v110 = vld [vmem:[#allocation2 + $0x260] sm:$0xff]
    %v111 = vld [vmem:[#allocation2 + $0x268] sm:$0xff]
    %v112 = vld [vmem:[#allocation2 + $0x270] sm:$0xff]
    %v113 = vld [vmem:[#allocation2 + $0x278] sm:$0xff]
    %v114 = vld [vmem:[#allocation2 + $0x280] sm:$0xff]
    %v115 = vld [vmem:[#allocation2 + $0x288] sm:$0xff]
    %v116 = vld [vmem:[#allocation2 + $0x290] sm:$0xff]
    %v117 = vld [vmem:[#allocation2 + $0x298] sm:$0xff]
    %v118 = vld [vmem:[#allocation2 + $0x2a0] sm:$0xff]
    %v119 = vld [vmem:[#allocation2 + $0x2a8] sm:$0xff]
    %v120 = vld [vmem:[#allocation2 + $0x2b0] sm:$0xff]
    %v121 = vld [vmem:[#allocation2 + $0x2b8] sm:$0xff]
    %v122 = vld [vmem:[#allocation2 + $0x2c0] sm:$0xff]
    %v123 = vld [vmem:[#allocation2 + $0x2c8] sm:$0xff]
    %v124 = vld [vmem:[#allocation2 + $0x2d0] sm:$0xff]
    %v125 = vld [vmem:[#allocation2 + $0x2d8] sm:$0xff]
    %v126 = vld [vmem:[#allocation2 + $0x2e0] sm:$0xff]
    %v127 = vld [vmem:[#allocation2 + $0x2e8] sm:$0xff]
    %v128 = vld [vmem:[#allocation2 + $0x2f0] sm:$0xff]
    %v129 = vld [vmem:[#allocation2 + $0x2f8] sm:$0xff]
    %v130 = vld [vmem:[#allocation2 + $0x300] sm:$0xff]
    %v131 = vld [vmem:[#allocation2 + $0x308] sm:$0xff]
    %v132 = vld [vmem:[#allocation2 + $0x310] sm:$0xff]
    %v133 = vld [vmem:[#allocation2 + $0x318] sm:$0xff]
    %v134 = vld [vmem:[#allocation2 + $0x320] sm:$0xff]
    %v135 = vld [vmem:[#allocation2 + $0x328] sm:$0xff]
    %v136 = vld [vmem:[#allocation2 + $0x330] sm:$0xff]
    %v137 = vld [vmem:[#allocation2 + $0x338] sm:$0xff]
    %v138 = vld [vmem:[#allocation2 + $0x340] sm:$0xff]
    %v139 = vld [vmem:[#allocation2 + $0x348] sm:$0xff]
    %v140 = vld [vmem:[#allocation2 + $0x350] sm:$0xff]
    %v141 = vld [vmem:[#allocation2 + $0x358] sm:$0xff]
    %v142 = vld [vmem:[#allocation2 + $0x360] sm:$0xff]
    %v143 = vld [vmem:[#allocation2 + $0x368] sm:$0xff]
    %v144 = vld [vmem:[#allocation2 + $0x370] sm:$0xff]
    %v145 = vld [vmem:[#allocation2 + $0x378] sm:$0xff]
    %v146 = vld [vmem:[#allocation2 + $0x380] sm:$0xff]
    %v147 = vld [vmem:[#allocation2 + $0x388] sm:$0xff]
    %v148 = vld [vmem:[#allocation2 + $0x390] sm:$0xff]
    %v149 = vld [vmem:[#allocation2 + $0x398] sm:$0xff]
    %v150 = vld [vmem:[#allocation2 + $0x3a0] sm:$0xff]
    %v151 = vld [vmem:[#allocation2 + $0x3a8] sm:$0xff]
    %v152 = vld [vmem:[#allocation2 + $0x3b0] sm:$0xff]
    %v153 = vld [vmem:[#allocation2 + $0x3b8] sm:$0xff]
    %v154 = vld [vmem:[#allocation2 + $0x3c0] sm:$0xff]
    %v155 = vld [vmem:[#allocation2 + $0x3c8] sm:$0xff]
    %v156 = vld [vmem:[#allocation2 + $0x3d0] sm:$0xff]
    %v157 = vld [vmem:[#allocation2 + $0x3d8] sm:$0xff]
    %v158 = vld [vmem:[#allocation2 + $0x3e0] sm:$0xff]
    %v159 = vld [vmem:[#allocation2 + $0x3e8] sm:$0xff]
    %v160 = vld [vmem:[#allocation2 + $0x3f0] sm:$0xff]
    %v161 = vld [vmem:[#allocation2 + $0x3f8] sm:$0xff]
    %162 = vmatprep.subr.mxu0 %v35
    %163 = vmatpush1.msra.mxu0 %v34
    %164 = vmatprep.subr.mxu0 %v39
    %165 = vmatpush1.msra.mxu0 %v38
    %166 = vmatprep.subr.mxu0 %v43
    %167 = vmatpush1.msra.mxu0 %v42
    %168 = vmatprep.subr.mxu0 %v47
    %169 = vmatpush1.msra.mxu0 %v46
    %170 = vmatprep.subr.mxu0 %v51
    %171 = vmatpush1.msra.mxu0 %v50
    %172 = vmatprep.subr.mxu0 %v55
    %173 = vmatpush1.msra.mxu0 %v54
    %174 = vmatprep.subr.mxu0 %v59
    %175 = vmatpush1.msra.mxu0 %v58
    %176 = vmatprep.subr.mxu0 %v63
    %177 = vmatpush1.msra.mxu0 %v62
    %178 = vmatprep.subr.mxu0 %v67
    %179 = vmatpush1.msra.mxu0 %v66
    %180 = vmatprep.subr.mxu0 %v71
    %181 = vmatpush1.msra.mxu0 %v70
    %182 = vmatprep.subr.mxu0 %v75
    %183 = vmatpush1.msra.mxu0 %v74
    %184 = vmatprep.subr.mxu0 %v79
    %185 = vmatpush1.msra.mxu0 %v78
    %186 = vmatprep.subr.mxu0 %v83
    %187 = vmatpush1.msra.mxu0 %v82
    %188 = vmatprep.subr.mxu0 %v87
    %189 = vmatpush1.msra.mxu0 %v86
    %190 = vmatprep.subr.mxu0 %v91
    %191 = vmatpush1.msra.mxu0 %v90
    %192 = vmatprep.subr.mxu0 %v95
    %193 = vmatpush1.msra.mxu0 %v94
    %194 = vmatprep.subr.mxu0 %v99
    %195 = vmatpush1.msra.mxu0 %v98
    %196 = vmatprep.subr.mxu0 %v103
    %197 = vmatpush1.msra.mxu0 %v102
    %198 = vmatprep.subr.mxu0 %v107
    %199 = vmatpush1.msra.mxu0 %v106
    %200 = vmatprep.subr.mxu0 %v111
    %201 = vmatpush1.msra.mxu0 %v110
    %202 = vmatprep.subr.mxu0 %v115
    %203 = vmatpush1.msra.mxu0 %v114
    %204 = vmatprep.subr.mxu0 %v119
    %205 = vmatpush1.msra.mxu0 %v118
    %206 = vmatprep.subr.mxu0 %v123
    %207 = vmatpush1.msra.mxu0 %v122
    %208 = vmatprep.subr.mxu0 %v127
    %209 = vmatpush1.msra.mxu0 %v126
    %210 = vmatprep.subr.mxu0 %v131
    %211 = vmatpush1.msra.mxu0 %v130
    %212 = vmatprep.subr.mxu0 %v135
    %213 = vmatpush1.msra.mxu0 %v134
    %214 = vmatprep.subr.mxu0 %v139
    %215 = vmatpush1.msra.mxu0 %v138
    %216 = vmatprep.subr.mxu0 %v143
    %217 = vmatpush1.msra.mxu0 %v142
    %218 = vmatprep.subr.mxu0 %v147
    %219 = vmatpush1.msra.mxu0 %v146
    %220 = vmatprep.subr.mxu0 %v151
    %221 = vmatpush1.msra.mxu0 %v150
    %222 = vmatprep.subr.mxu0 %v155
    %223 = vmatpush1.msra.mxu0 %v154
    %224 = vmatprep.subr.mxu0 %v159
    %225 = vmatpush1.msra.mxu0 %v158
    %226 = vmatprep.mubr.f32.mxu0 %v33
    %227 = vmatmul.mubr.f32.gmra.mrb[0].mxu0 %v32
    %v228 = vpop.f32.mrb[0].mxu0
    %v229 = vadd.f32 0.0, %v228
    %v230 = vpop.f32.mrb[0].mxu0
    %v231 = vadd.f32 0.0, %v230
    %232 = vdwg.mxu0
    %233 = vmatprep.subr.mxu0 %v37
    %234 = vmatpush1.msra.mxu0 %v36
    %235 = vmatprep.subr.mxu0 %v41
    %236 = vmatpush1.msra.mxu0 %v40
    %237 = vmatprep.subr.mxu0 %v45
    %238 = vmatpush1.msra.mxu0 %v44
    %239 = vmatprep.subr.mxu0 %v49
    %240 = vmatpush1.msra.mxu0 %v48
    %241 = vmatprep.subr.mxu0 %v53
    %242 = vmatpush1.msra.mxu0 %v52
    %243 = vmatprep.subr.mxu0 %v57
    %244 = vmatpush1.msra.mxu0 %v56
    %245 = vmatprep.subr.mxu0 %v61
    %246 = vmatpush1.msra.mxu0 %v60
    %247 = vmatprep.subr.mxu0 %v65
    %248 = vmatpush1.msra.mxu0 %v64
    %249 = vmatprep.subr.mxu0 %v69
    %250 = vmatpush1.msra.mxu0 %v68
    %251 = vmatprep.subr.mxu0 %v73
    %252 = vmatpush1.msra.mxu0 %v72
    %253 = vmatprep.subr.mxu0 %v77
    %254 = vmatpush1.msra.mxu0 %v76
    %255 = vmatprep.subr.mxu0 %v81
    %256 = vmatpush1.msra.mxu0 %v80
    %257 = vmatprep.subr.mxu0 %v85
    %258 = vmatpush1.msra.mxu0 %v84
    %259 = vmatprep.subr.mxu0 %v89
    %260 = vmatpush1.msra.mxu0 %v88
    %261 = vmatprep.subr.mxu0 %v93
    %262 = vmatpush1.msra.mxu0 %v92
    %263 = vmatprep.subr.mxu0 %v97
    %264 = vmatpush1.msra.mxu0 %v96
    %265 = vmatprep.subr.mxu0 %v101
    %266 = vmatpush1.msra.mxu0 %v100
    %267 = vmatprep.subr.mxu0 %v105
    %268 = vmatpush1.msra.mxu0 %v104
    %269 = vmatprep.subr.mxu0 %v109
    %270 = vmatpush1.msra.mxu0 %v108
    %271 = vmatprep.subr.mxu0 %v113
    %272 = vmatpush1.msra.mxu0 %v112
    %273 = vmatprep.subr.mxu0 %v117
    %274 = vmatpush1.msra.mxu0 %v116
    %275 = vmatprep.subr.mxu0 %v121
    %276 = vmatpush1.msra.mxu0 %v120
    %277 = vmatprep.subr.mxu0 %v125
    %278 = vmatpush1.msra.mxu0 %v124
    %279 = vmatprep.subr.mxu0 %v129
    %280 = vmatpush1.msra.mxu0 %v128
    %281 = vmatprep.subr.mxu0 %v133
    %282 = vmatpush1.msra.mxu0 %v132
    %283 = vmatprep.subr.mxu0 %v137
    %284 = vmatpush1.msra.mxu0 %v136
    %285 = vmatprep.subr.mxu0 %v141
    %286 = vmatpush1.msra.mxu0 %v140
    %287 = vmatprep.subr.mxu0 %v145
    %288 = vmatpush1.msra.mxu0 %v144
    %289 = vmatprep.subr.mxu0 %v149
    %290 = vmatpush1.msra.mxu0 %v148
    %291 = vmatprep.subr.mxu0 %v153
    %292 = vmatpush1.msra.mxu0 %v152
    %293 = vmatprep.subr.mxu0 %v157
    %294 = vmatpush1.msra.mxu0 %v156
    %295 = vmatprep.subr.mxu0 %v161
    %296 = vmatpush1.msra.mxu0 %v160
    %297 = vmatprep.mubr.f32.mxu0 %v33
    %298 = vmatmul.mubr.f32.gmra.mrb[0].mxu0 %v32
    %v299 = vpop.f32.mrb[0].mxu0
    %v300 = vadd.f32 0.0, %v299
    %v301 = vpop.f32.mrb[0].mxu0
    %v302 = vadd.f32 0.0, %v301
    %303 = vdwg.mxu0
    %v304 = vand.u32 2147483647, %v229
    %v305 = vand.u32 2147483647, %v231
    %v306 = vand.u32 2147483647, %v300
    %v307 = vand.u32 2147483647, %v302
    %v308 = vadd.f32 %v304, %v305
    %v309 = vadd.f32 %v308, %v306
    %v310 = vadd.f32 %v309, %v307
    %311 = vadd.xlane.f32.xlu0 %v310
    %v312 = vpop.xlane.xlu0 %311
    %v313 = vrot.slane %v312, 4
    %v314 = vadd.f32 %v312, %v313
    %v315 = vrot.slane %v314, 2
    %v316 = vadd.f32 %v314, %v315
    %v317 = vrot.slane %v316, 1
    %v318 = vadd.f32 %v316, %v317
    %s319 = vtos %v318
    %v320 = vstv %s319
    %321 = vst [vmem:[%s3] sm:$0xff] %v320
    // Predicated region
    $region18: #{fft_loss.1} parent=1 // pred_check
      _
    $region19: #{fft_loss.1} parent=1 // pred_check_branch
      %323 = sbr.rel (0) target = $region21
    $region20: #{fft_loss.1} parent=1 // pred_region
      _
    $region21: #{fft_loss.1} parent=1 // pred_fallthru
      _
    // Predicated region
    $region22: #{fft_loss.1} parent=1 // pred_check
      _
    $region23: #{fft_loss.1} parent=1 // pred_check_branch
      %325 = sbr.rel (0) target = $region25
    $region24: #{fft_loss.1} parent=1 // pred_region
      _
    $region25: #{fft_loss.1} parent=1 // pred_fallthru
      _
    %326 = vsyncpa [#allocation3], 1

</llo_original>
